<compile_context>
chip_gen: v7x
topology: tpu7x:2x2x1
jax: 0.10.0
libtpu: 0.0.40
codegen_flags: <defaults>
</compile_context>

<pallas_src>
import functools

import jax
import jax.numpy as jnp
from jax.experimental import pallas as pl
from jax.experimental.pallas import tpu as pltpu


def _ipw_kernel(xu_ref, xi_ref, w1_ref, b1_ref, w2_ref, b2_ref,
                emb_ref, sim_ref, *, D, l2_normalization):
    # Lane-concat the user|item features for this batch tile and cast to bf16
    # for the MXU (cheap in-VMEM layout op; avoids a wrapper-side HBM pass).
    x = jnp.concatenate([xu_ref[...], xi_ref[...]], axis=-1).astype(jnp.bfloat16)

    # Layer 1 (both towers at once, block-diagonal weights): MXU, f32 accum.
    h = jnp.dot(x, w1_ref[...], preferred_element_type=jnp.float32)
    h = jnp.maximum(h + b1_ref[...], 0.0)                     # bias + ReLU (f32)

    # Layer 2: (tb, H1u+H1i) @ (H1u+H1i, 2D) -> (tb, 2D), f32 accum.
    # TODO(synk): on v5e (128x128 MXU) two separate (tb,H1)@(H1,D) dots would
    # skip the all-zero off-diagonal blocks; kept fused for v6e/v7x 256-wide MXU.
    e = jnp.dot(h.astype(jnp.bfloat16), w2_ref[...],
                preferred_element_type=jnp.float32)
    e = e + b2_ref[...]

    u = e[:, :D]                                              # user embedding
    it = e[:, D:]                                             # item embedding

    if l2_normalization:
        # Clamp the squared norm (F.normalize-style eps) so zero / padded rows
        # do not produce inf; matches torch within tolerance otherwise.
        u = u * jax.lax.rsqrt(
            jnp.maximum(jnp.sum(u * u, axis=-1, keepdims=True), 1e-24))
        it = it * jax.lax.rsqrt(
            jnp.maximum(jnp.sum(it * it, axis=-1, keepdims=True), 1e-24))
        e = jnp.concatenate([u, it], axis=-1)                 # one full-width store

    # Single lane-dense (tb, 2D) store of both embeddings (dtype configurable).
    emb_ref[...] = e.astype(emb_ref.dtype)

    # similarities = sum_d u[b,d] * it[b,d], produced lane-major as (1, tb)
    # via a ones-row matmul so the sim store is a full-lane vst instead of a
    # masked 1-lane store.  Explicit bf16 operands / f32 accumulation (the MXU
    # would truncate f32 operands to bf16 anyway under default precision).
    p = (u * it).astype(jnp.bfloat16)                         # (tb, D)
    ones_row = jnp.ones((1, D), dtype=jnp.bfloat16)
    sim_row = jax.lax.dot_general(
        ones_row, p, (((1,), (1,)), ((), ())),
        preferred_element_type=jnp.float32)                   # (1, tb)
    sim_ref[...] = sim_row.reshape(sim_ref.shape).astype(sim_ref.dtype)


_MAX_TB = 512


def _choose_tile(B):
    """Pick a batch tile: as large as possible, but keep >= 2 grid steps when
    the batch allows so v7x megacore can shard the 'parallel' axis."""
    if B <= 8:
        return 8
    if B <= 2 * _MAX_TB:
        return 8 * pl.cdiv(pl.cdiv(B, 2), 8)   # 2 tiles, sublane-aligned
    return _MAX_TB


def prepare_ipw_params(params):
    """One-time (model-build) fusion of the two towers into block-diagonal
    bf16 weights + concatenated f32 biases. Hoisted off the per-forward path."""
    Fu, H1u = params["w1u"].shape
    Fi, H1i = params["w1i"].shape
    D = params["w2u"].shape[1]
    assert params["w2i"].shape[1] == D
    F, H = Fu + Fi, H1u + H1i

    w1 = jnp.zeros((F, H), jnp.float32)
    w1 = w1.at[:Fu, :H1u].set(params["w1u"]).at[Fu:, H1u:].set(params["w1i"])
    b1 = jnp.concatenate([params["b1u"].reshape(1, -1),
                          params["b1i"].reshape(1, -1)], axis=-1)       # (1, H)
    w2 = jnp.zeros((H, 2 * D), jnp.float32)
    w2 = w2.at[:H1u, :D].set(params["w2u"]).at[H1u:, D:].set(params["w2i"])
    b2 = jnp.concatenate([params["b2u"].reshape(1, -1),
                          params["b2i"].reshape(1, -1)], axis=-1)       # (1, 2D)

    return {
        "w1": w1.astype(jnp.bfloat16),
        "b1": b1.astype(jnp.float32),
        "w2": w2.astype(jnp.bfloat16),
        "b2": b2.astype(jnp.float32),
    }


def ipw_forward(x_user, x_item, fused, *, l2_normalization=False, tb=None,
                emb_dtype=jnp.float32):
    """Returns (similarities [B], user_embeddings [B, D], item_embeddings [B, D]).

    `fused` is the output of `prepare_ipw_params` (precomputed once)."""
    B, Fu = x_user.shape
    _, Fi = x_item.shape
    F = Fu + Fi
    H = fused["w1"].shape[1]
    assert fused["w1"].shape[0] == F
    D = fused["w2"].shape[1] // 2

    tb = _choose_tile(B) if tb is None else tb
    B_pad = tb * pl.cdiv(B, tb)
    if B_pad != B:
        pad = B_pad - B
        x_user = jnp.pad(x_user, ((0, pad), (0, 0)))
        x_item = jnp.pad(x_item, ((0, pad), (0, 0)))
    num_tiles = B_pad // tb

    full = lambda shp: pl.BlockSpec(shp, lambda i: (0,) * len(shp))
    kernel = functools.partial(_ipw_kernel, D=D,
                               l2_normalization=l2_normalization)

    # TODO(synk): for multi-MB tower weights, switch the constant-index weight
    # BlockSpecs to memory_space=pl.ANY + a one-shot DMA at grid step 0 (or
    # pipeline_mode=pl.Buffered(1)) to avoid double-buffering them in VMEM.
    emb, sim = pl.pallas_call(
        kernel,
        out_shape=(
            jax.ShapeDtypeStruct((B_pad, 2 * D), emb_dtype),        # user|item
            jax.ShapeDtypeStruct((num_tiles, 1, tb), jnp.float32),  # sim rows
        ),
        grid_spec=pltpu.PrefetchScalarGridSpec(
            num_scalar_prefetch=0,
            grid=(num_tiles,),
            in_specs=[
                pl.BlockSpec((tb, Fu), lambda i: (i, 0)),  # user features
                pl.BlockSpec((tb, Fi), lambda i: (i, 0)),  # item features
                full((F, H)), full((1, H)),                # fused layer 1
                full((H, 2 * D)), full((1, 2 * D)),        # fused layer 2
            ],
            out_specs=[
                pl.BlockSpec((tb, 2 * D), lambda i: (i, 0)),
                pl.BlockSpec((1, 1, tb), lambda i: (i, 0, 0)),
            ],
        ),
        compiler_params=pltpu.CompilerParams(
            dimension_semantics=("parallel",),
        ),
    )(x_user, x_item, fused["w1"], fused["b1"], fused["w2"], fused["b2"])

    sim = sim.reshape(B_pad)[:B]
    u_emb = emb[:B, :D]
    i_emb = emb[:B, D:]
    return sim, u_emb, i_emb


def _reference_forward(x_user, x_item, params, l2_normalization=False):
    def tower(x, w1, b1, w2, b2):
        h = jnp.maximum(x @ w1 + b1, 0.0)
        return h @ w2 + b2
    u = tower(x_user, params["w1u"], params["b1u"], params["w2u"], params["b2u"])
    i = tower(x_item, params["w1i"], params["b1i"], params["w2i"], params["b2i"])
    if l2_normalization:
        u = u / jnp.linalg.norm(u, axis=-1, keepdims=True)
        i = i / jnp.linalg.norm(i, axis=-1, keepdims=True)
    return jnp.sum(u * i, axis=-1), u, i


if __name__ == "__main__":
    # Module-consistent sizes: 2 user + 2 item sparse datatypes,
    # embedding `dimensions`=16, tower dnn_size=(128, 128).
    B = 256           # batch (2 tiles of 128 -> both v7x TensorCores used)
    dimensions = 16   # per-feature embedding dim
    n_user_feats = 2
    n_item_feats = 2
    Fu = n_user_feats * dimensions   # 32
    Fi = n_item_feats * dimensions   # 32
    H1, D = 128, 128                 # dnn_size (hidden, output-embedding dim)
    vocab = 50

    key = jax.random.PRNGKey(0)
    ks = jax.random.split(key, 12)

    # Deterministic parameter init (synthetic weights).
    scale = 0.05
    params = {
        "w1u": scale * jax.random.normal(ks[0], (Fu, H1), jnp.float32),
        "b1u": scale * jax.random.normal(ks[1], (1, H1), jnp.float32),
        "w2u": scale * jax.random.normal(ks[2], (H1, D), jnp.float32),
        "b2u": scale * jax.random.normal(ks[3], (1, D), jnp.float32),
        "w1i": scale * jax.random.normal(ks[4], (Fi, H1), jnp.float32),
        "b1i": scale * jax.random.normal(ks[5], (1, H1), jnp.float32),
        "w2i": scale * jax.random.normal(ks[6], (H1, D), jnp.float32),
        "b2i": scale * jax.random.normal(ks[7], (1, D), jnp.float32),
    }

    # Plain-JAX glue: sparse id -> embedding table lookup -> concat per tower.
    user_tables = scale * jax.random.normal(ks[8], (n_user_feats, vocab, dimensions), jnp.float32)
    item_tables = scale * jax.random.normal(ks[9], (n_item_feats, vocab, dimensions), jnp.float32)
    user_ids = jax.random.randint(ks[10], (B, n_user_feats), 0, vocab)
    item_ids = jax.random.randint(ks[11], (B, n_item_feats), 0, vocab)

    x_user = jnp.concatenate(
        [user_tables[f][user_ids[:, f]] for f in range(n_user_feats)], axis=-1)
    x_item = jnp.concatenate(
        [item_tables[f][item_ids[:, f]] for f in range(n_item_feats)], axis=-1)

    # One-time weight fusion (hoisted off the per-forward path).
    fused = jax.tree_util.tree_map(jax.device_put, prepare_ipw_params(params))

    # --- non-normalized path ------------------------------------------------
    fwd = jax.jit(functools.partial(ipw_forward, l2_normalization=False))
    sim, u_emb, i_emb = fwd(x_user, x_item, fused)
    jax.block_until_ready((sim, u_emb, i_emb))

    sim_ref, u_ref, i_ref = _reference_forward(x_user, x_item, params)
    assert sim.shape == (B,) and u_emb.shape == (B, D) and i_emb.shape == (B, D)
    assert jnp.allclose(sim, sim_ref, atol=5e-3, rtol=5e-2)
    assert jnp.allclose(u_emb, u_ref, atol=5e-3, rtol=5e-2)
    assert jnp.allclose(i_emb, i_ref, atol=5e-3, rtol=5e-2)

    # --- l2-normalized path -------------------------------------------------
    fwd_l2 = jax.jit(functools.partial(ipw_forward, l2_normalization=True))
    sim2, u2, i2 = fwd_l2(x_user, x_item, fused)
    jax.block_until_ready((sim2, u2, i2))

    sim2_ref, u2_ref, i2_ref = _reference_forward(
        x_user, x_item, params, l2_normalization=True)
    assert jnp.allclose(sim2, sim2_ref, atol=5e-3, rtol=5e-2)
    assert jnp.allclose(u2, u2_ref, atol=5e-3, rtol=5e-2)
    assert jnp.allclose(i2, i2_ref, atol=5e-3, rtol=5e-2)

    print("KERNEL_OK")
</pallas_src>

<mosaic_0001>
module attributes {stable_mosaic.version = 11 : i64} {
  func.func @_ipw_kernel(%arg0: i32, %arg1: memref<128x32xf32, #tpu.memory_space<vmem>>, %arg2: memref<128x32xf32, #tpu.memory_space<vmem>>, %arg3: memref<64x256xbf16, #tpu.memory_space<vmem>>, %arg4: memref<1x256xf32, #tpu.memory_space<vmem>>, %arg5: memref<256x256xbf16, #tpu.memory_space<vmem>>, %arg6: memref<1x256xf32, #tpu.memory_space<vmem>>, %arg7: memref<128x256xf32, #tpu.memory_space<vmem>>, %arg8: memref<1x1x128xf32, #tpu.memory_space<vmem>>) attributes {dimension_semantics = [#tpu.dimension_semantics<parallel>], iteration_bounds = array<i64: 2>, scalar_prefetch = 0 : i64, scratch_operands = 0 : i64, tpu.core_type = #tpu.core_type<tc>, window_params = [{transform_indices = @transform_0, window_bounds = array<i64: 128, 32>}, {transform_indices = @transform_1, window_bounds = array<i64: 128, 32>}, {pipeline_mode = #tpu.pipeline_mode<synchronous>, transform_indices = @transform_2, window_bounds = array<i64: 64, 256>}, {pipeline_mode = #tpu.pipeline_mode<synchronous>, transform_indices = @transform_3, window_bounds = array<i64: 1, 256>}, {pipeline_mode = #tpu.pipeline_mode<synchronous>, transform_indices = @transform_4, window_bounds = array<i64: 256, 256>}, {pipeline_mode = #tpu.pipeline_mode<synchronous>, transform_indices = @transform_5, window_bounds = array<i64: 1, 256>}, {transform_indices = @transform_6, window_bounds = array<i64: 128, 256>}, {transform_indices = @transform_7, window_bounds = array<i64: 1, 1, 128>}]} {
    %c0 = arith.constant 0 : index
    %c0_0 = arith.constant 0 : index
    %0 = vector.load %arg1[%c0, %c0_0] : memref<128x32xf32, #tpu.memory_space<vmem>>, vector<128x32xf32>
    %c0_1 = arith.constant 0 : index
    %c0_2 = arith.constant 0 : index
    %1 = vector.load %arg2[%c0_1, %c0_2] : memref<128x32xf32, #tpu.memory_space<vmem>>, vector<128x32xf32>
    %2 = tpu.concatenate %0, %1 in 1 : vector<128x32xf32>, vector<128x32xf32> -> vector<128x64xf32>
    %3 = arith.truncf %2 : vector<128x64xf32> to vector<128x64xbf16>
    %c0_3 = arith.constant 0 : index
    %c0_4 = arith.constant 0 : index
    %4 = vector.load %arg3[%c0_3, %c0_4] : memref<64x256xbf16, #tpu.memory_space<vmem>>, vector<64x256xbf16>
    %cst = arith.constant dense<0.000000e+00> : vector<128x256xf32>
    %5 = tpu.matmul %3, %4, %cst {dimension_numbers = #tpu.dot_dimension_numbers<[1], [0], [0], [1], [0, 0, 1, 1], [], []>} : vector<128x64xbf16>, vector<64x256xbf16>, vector<128x256xf32> -> vector<128x256xf32>
    %c0_5 = arith.constant 0 : index
    %c0_6 = arith.constant 0 : index
    %6 = vector.load %arg4[%c0_5, %c0_6] : memref<1x256xf32, #tpu.memory_space<vmem>>, vector<1x256xf32>
    %7 = vector.broadcast %6 : vector<1x256xf32> to vector<128x256xf32>
    %8 = arith.addf %5, %7 : vector<128x256xf32>
    %cst_7 = arith.constant 0.000000e+00 : f32
    %9 = vector.broadcast %cst_7 : f32 to vector<128x256xf32>
    %10 = arith.maximumf %8, %9 : vector<128x256xf32>
    %11 = arith.truncf %10 : vector<128x256xf32> to vector<128x256xbf16>
    %c0_8 = arith.constant 0 : index
    %c0_9 = arith.constant 0 : index
    %12 = vector.load %arg5[%c0_8, %c0_9] : memref<256x256xbf16, #tpu.memory_space<vmem>>, vector<256x256xbf16>
    %cst_10 = arith.constant dense<0.000000e+00> : vector<128x256xf32>
    %13 = tpu.matmul %11, %12, %cst_10 {dimension_numbers = #tpu.dot_dimension_numbers<[1], [0], [0], [1], [0, 0, 1, 1], [], []>} : vector<128x256xbf16>, vector<256x256xbf16>, vector<128x256xf32> -> vector<128x256xf32>
    %c0_11 = arith.constant 0 : index
    %c0_12 = arith.constant 0 : index
    %14 = vector.load %arg6[%c0_11, %c0_12] : memref<1x256xf32, #tpu.memory_space<vmem>>, vector<1x256xf32>
    %15 = vector.broadcast %14 : vector<1x256xf32> to vector<128x256xf32>
    %16 = arith.addf %13, %15 : vector<128x256xf32>
    %17 = vector.extract_strided_slice %16 {offsets = [0, 0], sizes = [128, 128], strides = [1, 1]} : vector<128x256xf32> to vector<128x128xf32>
    %18 = vector.extract_strided_slice %16 {offsets = [0, 128], sizes = [128, 128], strides = [1, 1]} : vector<128x256xf32> to vector<128x128xf32>
    %c0_13 = arith.constant 0 : index
    %c0_14 = arith.constant 0 : index
    %19 = vector.load %arg7[%c0_13, %c0_14] : memref<128x256xf32, #tpu.memory_space<vmem>>, vector<128x256xf32>
    tpu.vector_store %arg7[%c0_13, %c0_14], %16 {strides = array<i32>} : memref<128x256xf32, #tpu.memory_space<vmem>>, vector<128x256xf32>,
    %20 = arith.mulf %17, %18 : vector<128x128xf32>
    %21 = arith.truncf %20 : vector<128x128xf32> to vector<128x128xbf16>
    %cst_15 = arith.constant 1.000000e+00 : bf16
    %22 = vector.broadcast %cst_15 : bf16 to vector<1x128xbf16>
    %cst_16 = arith.constant dense<0.000000e+00> : vector<1x128xf32>
    %23 = tpu.matmul %22, %21, %cst_16 {dimension_numbers = #tpu.dot_dimension_numbers<[1], [1], [0], [0], [0, 0, 1, 0], [], []>} : vector<1x128xbf16>, vector<128x128xbf16>, vector<1x128xf32> -> vector<1x128xf32>
    %24 = vector.shape_cast %23 : vector<1x128xf32> to vector<1x1x128xf32>
    %c0_17 = arith.constant 0 : index
    %c0_18 = arith.constant 0 : index
    %c0_19 = arith.constant 0 : index
    %25 = vector.load %arg8[%c0_17, %c0_18, %c0_19] : memref<1x1x128xf32, #tpu.memory_space<vmem>>, vector<1x1x128xf32>
    tpu.vector_store %arg8[%c0_17, %c0_18, %c0_19], %24 {strides = array<i32>} : memref<1x1x128xf32, #tpu.memory_space<vmem>>, vector<1x1x128xf32>,
    return
  }
  func.func @transform_0(%arg0: i32) -> (i32, i32) {
    %c0_i32 = arith.constant 0 : i32
    %c0_i32_0 = arith.constant 0 : i32
    return %arg0, %c0_i32 : i32, i32
  }
  func.func @transform_1(%arg0: i32) -> (i32, i32) {
    %c0_i32 = arith.constant 0 : i32
    %c0_i32_0 = arith.constant 0 : i32
    return %arg0, %c0_i32 : i32, i32
  }
  func.func @transform_2(%arg0: i32) -> (i32, i32) {
    %c0_i32 = arith.constant 0 : i32
    %c0_i32_0 = arith.constant 0 : i32
    %c0_i32_1 = arith.constant 0 : i32
    return %c0_i32, %c0_i32_0 : i32, i32
  }
  func.func @transform_3(%arg0: i32) -> (i32, i32) {
    %c0_i32 = arith.constant 0 : i32
    %c0_i32_0 = arith.constant 0 : i32
    %c0_i32_1 = arith.constant 0 : i32
    return %c0_i32, %c0_i32_0 : i32, i32
  }
  func.func @transform_4(%arg0: i32) -> (i32, i32) {
    %c0_i32 = arith.constant 0 : i32
    %c0_i32_0 = arith.constant 0 : i32
    %c0_i32_1 = arith.constant 0 : i32
    return %c0_i32, %c0_i32_0 : i32, i32
  }
  func.func @transform_5(%arg0: i32) -> (i32, i32) {
    %c0_i32 = arith.constant 0 : i32
    %c0_i32_0 = arith.constant 0 : i32
    %c0_i32_1 = arith.constant 0 : i32
    return %c0_i32, %c0_i32_0 : i32, i32
  }
  func.func @transform_6(%arg0: i32) -> (i32, i32) {
    %c0_i32 = arith.constant 0 : i32
    %c0_i32_0 = arith.constant 0 : i32
    return %arg0, %c0_i32 : i32, i32
  }
  func.func @transform_7(%arg0: i32) -> (i32, i32, i32) {
    %c0_i32 = arith.constant 0 : i32
    %c0_i32_0 = arith.constant 0 : i32
    %c0_i32_1 = arith.constant 0 : i32
    return %arg0, %c0_i32, %c0_i32_0 : i32, i32, i32
  }
}

</mosaic_0001>

<llo_original>
// kernel: ipw_forward.1
$region0: #{ipw_forward.1}
  #allocation0 [shape = 'u32[]', space=smem, size = 0x4, offset = 0x4, fixed_abs, tag = 'smem constant byte address 0x4 - core index']
  #allocation1 [shape = 'u32[144,128]{1,0:T(1,128)}', space=vmem, size = 0x12000, scoped, tag = 'internal scratch']
  %s0 = inlined_call_operand.vmem [shape: f32[256,32], index: 0, kind: input, shape index: {}]
  %s1 = inlined_call_operand.vmem [shape: f32[256,32], index: 1, kind: input, shape index: {}]
  %s2 = inlined_call_operand.vmem [shape: bf16[64,256], index: 2, kind: input, shape index: {}]
  %s3 = inlined_call_operand.vmem [shape: f32[1,256], index: 3, kind: input, shape index: {}]
  %s4 = inlined_call_operand.vmem [shape: bf16[256,256], index: 4, kind: input, shape index: {}]
  %s5 = inlined_call_operand.vmem [shape: f32[1,256], index: 5, kind: input, shape index: {}]
  %s6 = inlined_call_operand.vmem [shape: f32[256,256], index: 6, kind: output, shape index: {0}]
  %s7 = inlined_call_operand.hbm [shape: f32[2,1,128], index: 7, kind: output, shape index: {1}]
  %8 = xla_tuple %s6, %s7
  %s9 = sld [smem:[#allocation0]]
  $region65: #{ipw_forward.1} parent=0
    _
  %s11 = ssub.s32 1, %s9
  %s12 = scalar_select 0, %s11, %s9
  $region1: #{ipw_forward.1} parent=0
    #allocation2 [shape = 'u8[1024]{0}', space=vmem, size = 0x400, scoped, tag = 'output window, operand 1']
    #allocation3 [shape = 's32[2]{0}', space=sflag, size = 0x8, scoped, tag = 'scoped memory for ipw_forward.1']
    %13 = vsyncpa [#allocation3], 0
    %s14 = scalar_lea.sflag [#allocation3], 1
    %15 = vsyncpa %s14, 0
    loop: start=0, step=1, limit=4
    $region2: #{ipw_forward.1} parent=1 // loop_pre_header
      _
    $region3: #{ipw_forward.1} parent=1 // loop_header
      %s17 = sphi 0, %s21
      %p18 = scmp.ge.s32.totalorder %s17, 4
      %s27 = sphi 0, %s29
      %s30 = sphi 0, %s27
      %s31 = sphi 0, %s30
      %s47 = sphi 0, %s31
      %s53 = sphi 0, %s55
      %s56 = sphi 0, %s53
      %s57 = sphi 0, %s56
      %s73 = sphi 0, %s57
      %s77 = sphi 0, %s77
      %s79 = sphi 0, %s77
      %s80 = sphi 0, %s79
      %s94 = sphi 0, %s80
      %s98 = sphi 0, %s98
      %s100 = sphi 0, %s98
      %s101 = sphi 0, %s100
      %s115 = sphi 0, %s101
      %s119 = sphi 0, %s119
      %s121 = sphi 0, %s119
      %s122 = sphi 0, %s121
      %s136 = sphi 0, %s122
      %s140 = sphi 0, %s140
      %s142 = sphi 0, %s140
      %s143 = sphi 0, %s142
      %s157 = sphi 0, %s143
      %s163 = sphi 0, %s165
      %s166 = sphi 0, %s163
      %s167 = sphi 0, %s166
      %s183 = sphi 0, %s167
      %s189 = sphi 0, %s191
      %s192 = sphi 0, %s189
      %s193 = sphi 0, %s192
      %s209 = sphi 0, %s193
    $region4: #{ipw_forward.1} parent=1 // loop_header_branch
      %20 = sbr.rel (%p18) target = $region8
    $region5: #{ipw_forward.1} parent=1 // loop_body
      %s22 = ssub.s32 %s17, 1
      %s23 = ssub.s32 %s17, 2
      %s24 = sadd.s32 %s17, 1
      %s25 = ssub.s32 %s17, %s24
      %p26 = scmp.eq.s32.totalorder %s25, 0
      %s28 = sadd.s32 %s27, 1
      %s29 = scalar_select %p26, %s27, %s28
      %p32 = pneg %p26
      %p33 = scmp.eq.s32.totalorder %s17, 1
      %p34 = por %p32, %p33
      %p35 = scmp.ne.s32.totalorder %s27, %s30
      %p36 = scmp.eq.s32.totalorder %s17, 0
      %p37 = por %p35, %p36
      %p38 = scmp.ne.s32.totalorder %s27, %s30
      %p39 = scmp.eq.s32.totalorder %s22, 1
      %p40 = por %p38, %p39
      %p41 = scmp.ne.s32.totalorder %s30, %s31
      %p42 = scmp.eq.s32.totalorder %s22, 0
      %p43 = por %p41, %p42
      %p44 = scmp.ne.s32.totalorder %s30, %s31
      %p45 = scmp.eq.s32.totalorder %s23, 1
      %p46 = por %p44, %p45
      %p48 = scmp.ne.s32.totalorder %s31, %s47
      %p49 = scmp.eq.s32.totalorder %s23, 0
      %p50 = por %p48, %p49
      %s51 = ssub.s32 %s17, %s24
      %p52 = scmp.eq.s32.totalorder %s51, 0
      %s54 = sadd.s32 %s53, 1
      %s55 = scalar_select %p52, %s53, %s54
      %p58 = pneg %p52
      %p59 = scmp.eq.s32.totalorder %s17, 1
      %p60 = por %p58, %p59
      %p61 = scmp.ne.s32.totalorder %s53, %s56
      %p62 = scmp.eq.s32.totalorder %s17, 0
      %p63 = por %p61, %p62
      %p64 = scmp.ne.s32.totalorder %s53, %s56
      %p65 = scmp.eq.s32.totalorder %s22, 1
      %p66 = por %p64, %p65
      %p67 = scmp.ne.s32.totalorder %s56, %s57
      %p68 = scmp.eq.s32.totalorder %s22, 0
      %p69 = por %p67, %p68
      %p70 = scmp.ne.s32.totalorder %s56, %s57
      %p71 = scmp.eq.s32.totalorder %s23, 1
      %p72 = por %p70, %p71
      %p74 = scmp.ne.s32.totalorder %s57, %s73
      %p75 = scmp.eq.s32.totalorder %s23, 0
      %p76 = por %p74, %p75
      %s78 = sadd.s32 %s77, 1
      %p81 = scmp.eq.s32.totalorder %s17, 1
      %p82 = scmp.ne.s32.totalorder %s77, %s79
      %p83 = scmp.eq.s32.totalorder %s17, 0
      %p84 = por %p82, %p83
      %p85 = scmp.ne.s32.totalorder %s77, %s79
      %p86 = scmp.eq.s32.totalorder %s22, 1
      %p87 = por %p85, %p86
      %p88 = scmp.ne.s32.totalorder %s79, %s80
      %p89 = scmp.eq.s32.totalorder %s22, 0
      %p90 = por %p88, %p89
      %p91 = scmp.ne.s32.totalorder %s79, %s80
      %p92 = scmp.eq.s32.totalorder %s23, 1
      %p93 = por %p91, %p92
      %p95 = scmp.ne.s32.totalorder %s80, %s94
      %p96 = scmp.eq.s32.totalorder %s23, 0
      %p97 = por %p95, %p96
      %s99 = sadd.s32 %s98, 1
      %p102 = scmp.eq.s32.totalorder %s17, 1
      %p103 = scmp.ne.s32.totalorder %s98, %s100
      %p104 = scmp.eq.s32.totalorder %s17, 0
      %p105 = por %p103, %p104
      %p106 = scmp.ne.s32.totalorder %s98, %s100
      %p107 = scmp.eq.s32.totalorder %s22, 1
      %p108 = por %p106, %p107
      %p109 = scmp.ne.s32.totalorder %s100, %s101
      %p110 = scmp.eq.s32.totalorder %s22, 0
      %p111 = por %p109, %p110
      %p112 = scmp.ne.s32.totalorder %s100, %s101
      %p113 = scmp.eq.s32.totalorder %s23, 1
      %p114 = por %p112, %p113
      %p116 = scmp.ne.s32.totalorder %s101, %s115
      %p117 = scmp.eq.s32.totalorder %s23, 0
      %p118 = por %p116, %p117
      %s120 = sadd.s32 %s119, 1
      %p123 = scmp.eq.s32.totalorder %s17, 1
      %p124 = scmp.ne.s32.totalorder %s119, %s121
      %p125 = scmp.eq.s32.totalorder %s17, 0
      %p126 = por %p124, %p125
      %p127 = scmp.ne.s32.totalorder %s119, %s121
      %p128 = scmp.eq.s32.totalorder %s22, 1
      %p129 = por %p127, %p128
      %p130 = scmp.ne.s32.totalorder %s121, %s122
      %p131 = scmp.eq.s32.totalorder %s22, 0
      %p132 = por %p130, %p131
      %p133 = scmp.ne.s32.totalorder %s121, %s122
      %p134 = scmp.eq.s32.totalorder %s23, 1
      %p135 = por %p133, %p134
      %p137 = scmp.ne.s32.totalorder %s122, %s136
      %p138 = scmp.eq.s32.totalorder %s23, 0
      %p139 = por %p137, %p138
      %s141 = sadd.s32 %s140, 1
      %p144 = scmp.eq.s32.totalorder %s17, 1
      %p145 = scmp.ne.s32.totalorder %s140, %s142
      %p146 = scmp.eq.s32.totalorder %s17, 0
      %p147 = por %p145, %p146
      %p148 = scmp.ne.s32.totalorder %s140, %s142
      %p149 = scmp.eq.s32.totalorder %s22, 1
      %p150 = por %p148, %p149
      %p151 = scmp.ne.s32.totalorder %s142, %s143
      %p152 = scmp.eq.s32.totalorder %s22, 0
      %p153 = por %p151, %p152
      %p154 = scmp.ne.s32.totalorder %s142, %s143
      %p155 = scmp.eq.s32.totalorder %s23, 1
      %p156 = por %p154, %p155
      %p158 = scmp.ne.s32.totalorder %s143, %s157
      %p159 = scmp.eq.s32.totalorder %s23, 0
      %p160 = por %p158, %p159
      %s161 = ssub.s32 %s17, %s24
      %p162 = scmp.eq.s32.totalorder %s161, 0
      %s164 = sadd.s32 %s163, 1
      %s165 = scalar_select %p162, %s163, %s164
      %p168 = pneg %p162
      %p169 = scmp.eq.s32.totalorder %s17, 1
      %p170 = por %p168, %p169
      %p171 = scmp.ne.s32.totalorder %s163, %s166
      %p172 = scmp.eq.s32.totalorder %s17, 0
      %p173 = por %p171, %p172
      %p174 = scmp.ne.s32.totalorder %s163, %s166
      %p175 = scmp.eq.s32.totalorder %s22, 1
      %p176 = por %p174, %p175
      %p177 = scmp.ne.s32.totalorder %s166, %s167
      %p178 = scmp.eq.s32.totalorder %s22, 0
      %p179 = por %p177, %p178
      %p180 = scmp.ne.s32.totalorder %s166, %s167
      %p181 = scmp.eq.s32.totalorder %s23, 1
      %p182 = por %p180, %p181
      %p184 = scmp.ne.s32.totalorder %s167, %s183
      %p185 = scmp.eq.s32.totalorder %s23, 0
      %p186 = por %p184, %p185
      %s187 = ssub.s32 %s17, %s24
      %p188 = scmp.eq.s32.totalorder %s187, 0
      %s190 = sadd.s32 %s189, 1
      %s191 = scalar_select %p188, %s189, %s190
      %p194 = pneg %p188
      %p195 = scmp.eq.s32.totalorder %s17, 1
      %p196 = por %p194, %p195
      %p197 = scmp.ne.s32.totalorder %s189, %s192
      %p198 = scmp.eq.s32.totalorder %s17, 0
      %p199 = por %p197, %p198
      %p200 = scmp.ne.s32.totalorder %s189, %s192
      %p201 = scmp.eq.s32.totalorder %s22, 1
      %p202 = por %p200, %p201
      %p203 = scmp.ne.s32.totalorder %s192, %s193
      %p204 = scmp.eq.s32.totalorder %s22, 0
      %p205 = por %p203, %p204
      %p206 = scmp.ne.s32.totalorder %s192, %s193
      %p207 = scmp.eq.s32.totalorder %s23, 1
      %p208 = por %p206, %p207
      %p210 = scmp.ne.s32.totalorder %s193, %s209
      %p211 = scmp.eq.s32.totalorder %s23, 0
      %p212 = por %p210, %p211
      %p213 = scmp.le.s32.totalorder 1, %s17
      %p214 = scmp.lt.s32.totalorder %s17, 3
      %p215 = pnand %p213, %p214
      %p216 = pneg %p215
      // Predicated region
      $region9: #{ipw_forward.1} parent=5 // pred_check
        _
      $region10: #{ipw_forward.1} parent=5 // pred_check_branch
        %218 = sbr.rel (%p215) target = $region12
      $region11: #{ipw_forward.1} parent=5 // pred_region
        %s219 = ssub.s32 %s17, 1
        // Predicated region
        $region13: #{ipw_forward.1} parent=11 // pred_check
          %p220 = pneg %p90
        $region14: #{ipw_forward.1} parent=11 // pred_check_branch
          %222 = sbr.rel (%p220) target = $region16
        $region15: #{ipw_forward.1} parent=11 // pred_region
          _
        $region16: #{ipw_forward.1} parent=11 // pred_fallthru
          _
        // Predicated region
        $region17: #{ipw_forward.1} parent=11 // pred_check
          %p223 = pneg %p111
        $region18: #{ipw_forward.1} parent=11 // pred_check_branch
          %225 = sbr.rel (%p223) target = $region20
        $region19: #{ipw_forward.1} parent=11 // pred_region
          _
        $region20: #{ipw_forward.1} parent=11 // pred_fallthru
          _
        // Predicated region
        $region21: #{ipw_forward.1} parent=11 // pred_check
          %p226 = pneg %p132
        $region22: #{ipw_forward.1} parent=11 // pred_check_branch
          %228 = sbr.rel (%p226) target = $region24
        $region23: #{ipw_forward.1} parent=11 // pred_region
          _
        $region24: #{ipw_forward.1} parent=11 // pred_fallthru
          _
        // Predicated region
        $region25: #{ipw_forward.1} parent=11 // pred_check
          %p229 = pneg %p153
        $region26: #{ipw_forward.1} parent=11 // pred_check_branch
          %231 = sbr.rel (%p229) target = $region28
        $region27: #{ipw_forward.1} parent=11 // pred_region
          _
        $region28: #{ipw_forward.1} parent=11 // pred_fallthru
          _
      $region12: #{ipw_forward.1} parent=5 // pred_fallthru
        _
      %p232 = scmp.lt.s32.totalorder %s17, 2
      // Predicated region
      $region29: #{ipw_forward.1} parent=5 // pred_check
        %p233 = pneg %p232
      $region30: #{ipw_forward.1} parent=5 // pred_check_branch
        %235 = sbr.rel (%p233) target = $region32
      $region31: #{ipw_forward.1} parent=5 // pred_region
        // Predicated region
        $region33: #{ipw_forward.1} parent=31 // pred_check
          %p236 = pneg %p37
        $region34: #{ipw_forward.1} parent=31 // pred_check_branch
          %238 = sbr.rel (%p236) target = $region36
        $region35: #{ipw_forward.1} parent=31 // pred_region
          %s239 = smul.u32 16, %s17
          %p240 = scmp.lt.s32.totalorder %s239, 31
          %s241 = scalar_select %p240, %s239, 31
          %s242 = smul.addr %s241, 8
          %s243 = scalar_lea.vmem %s0, %s242
          %s244 = smul.u32 16, %s17
        $region36: #{ipw_forward.1} parent=31 // pred_fallthru
          _
        // Predicated region
        $region37: #{ipw_forward.1} parent=31 // pred_check
          %p245 = pneg %p63
        $region38: #{ipw_forward.1} parent=31 // pred_check_branch
          %247 = sbr.rel (%p245) target = $region40
        $region39: #{ipw_forward.1} parent=31 // pred_region
          %s248 = smul.u32 16, %s17
          %p249 = scmp.lt.s32.totalorder %s248, 31
          %s250 = scalar_select %p249, %s248, 31
          %s251 = smul.addr %s250, 8
          %s252 = scalar_lea.vmem %s1, %s251
          %s253 = smul.u32 16, %s17
        $region40: #{ipw_forward.1} parent=31 // pred_fallthru
          _
      $region32: #{ipw_forward.1} parent=5 // pred_fallthru
        _
      %p254 = scmp.le.s32.totalorder 1, %s17
      %p255 = scmp.lt.s32.totalorder %s17, 3
      %p256 = pnand %p254, %p255
      %p257 = pneg %p256
      // Predicated region
      $region41: #{ipw_forward.1} parent=5 // pred_check
        _
      $region42: #{ipw_forward.1} parent=5 // pred_check_branch
        %259 = sbr.rel (%p256) target = $region44
      $region43: #{ipw_forward.1} parent=5 // pred_region
        %s260 = ssub.s32 %s17, 1
        %s261 = smul.u32 16, %s22
        %p262 = scmp.lt.s32.totalorder %s261, 31
        %s263 = scalar_select %p262, %s261, 31
        %s264 = smul.addr %s263, 8
        %s265 = scalar_lea.vmem %s0, %s264
        %p266 = pneg %p43
        %p267 = pneg %p40
        %s268 = smul.u32 16, %s22
        %p269 = scmp.lt.s32.totalorder %s268, 31
        %s270 = scalar_select %p269, %s268, 31
        %s271 = smul.addr %s270, 8
        %s272 = scalar_lea.vmem %s1, %s271
        %p273 = pneg %p69
        %p274 = pneg %p66
        %p275 = pneg %p90
        %p276 = pneg %p87
        %p277 = pneg %p111
        %p278 = pneg %p108
        %p279 = pneg %p132
        %p280 = pneg %p129
        %p281 = pneg %p153
        %p282 = pneg %p150
        %p283 = pneg %p179
        %p284 = pneg %p176
        %s285 = smul.u32 16, %s22
        %p286 = scmp.lt.s32.totalorder %s285, 31
        %s287 = scalar_select %p286, %s285, 31
        %s288 = smul.addr %s287, 2
        %s289 = smul.addr %s288, 8
        %s290 = scalar_lea.vmem %s6, %s289
        %p291 = pneg %p205
        %p292 = pneg %p202
        %s293 = sand.u32 %s192, 1
        %s294 = scalar_lea.sflag [#allocation3], %s293
        %s295 = sand.u32 %s192, 1
        %s296 = scalar_lea.vmem [#allocation2], %s295
        %s297 = smul.u32 16, %s22
        %p298 = scmp.lt.s32.totalorder %s297, 31
        %s299 = scalar_select %p298, %s297, 31
        %s300 = smul.addr %s299, 8
        %s301 = scalar_lea.vmem %s0, %s300
        %s302 = smul.u32 16, %s22
        %s303 = smul.u32 16, %s22
        %p304 = scmp.lt.s32.totalorder %s303, 31
        %s305 = scalar_select %p304, %s303, 31
        %s306 = smul.addr %s305, 8
        %s307 = scalar_lea.vmem %s1, %s306
        %s308 = smul.u32 16, %s22
        %s309 = smul.u32 16, %s22
        %p310 = scmp.lt.s32.totalorder %s309, 31
        %s311 = scalar_select %p310, %s309, 31
        %s312 = smul.addr %s311, 2
        %s313 = smul.addr %s312, 8
        %s314 = scalar_lea.vmem %s6, %s313
        %s315 = smul.u32 16, %s22
        %v318 = vld [vmem:[%s301] sm:$0xff]
        %v319 = vld [vmem:[%s301 + $0x8] sm:$0xff]
        %v320 = vld [vmem:[%s301 + $0x10] sm:$0xff]
        %v321 = vld [vmem:[%s301 + $0x18] sm:$0xff]
        %v322 = vld [vmem:[%s301 + $0x20] sm:$0xff]
        %v323 = vld [vmem:[%s301 + $0x28] sm:$0xff]
        %v324 = vld [vmem:[%s301 + $0x30] sm:$0xff]
        %v325 = vld [vmem:[%s301 + $0x38] sm:$0xff]
        %v326 = vld [vmem:[%s301 + $0x40] sm:$0xff]
        %v327 = vld [vmem:[%s301 + $0x48] sm:$0xff]
        %v328 = vld [vmem:[%s301 + $0x50] sm:$0xff]
        %v329 = vld [vmem:[%s301 + $0x58] sm:$0xff]
        %v330 = vld [vmem:[%s301 + $0x60] sm:$0xff]
        %v331 = vld [vmem:[%s301 + $0x68] sm:$0xff]
        %v332 = vld [vmem:[%s301 + $0x70] sm:$0xff]
        %v333 = vld [vmem:[%s301 + $0x78] sm:$0xff]
        %v334 = vld [vmem:[%s307] sm:$0xff]
        %v335 = vld [vmem:[%s307 + $0x8] sm:$0xff]
        %v336 = vld [vmem:[%s307 + $0x10] sm:$0xff]
        %v337 = vld [vmem:[%s307 + $0x18] sm:$0xff]
        %v338 = vld [vmem:[%s307 + $0x20] sm:$0xff]
        %v339 = vld [vmem:[%s307 + $0x28] sm:$0xff]
        %v340 = vld [vmem:[%s307 + $0x30] sm:$0xff]
        %v341 = vld [vmem:[%s307 + $0x38] sm:$0xff]
        %v342 = vld [vmem:[%s307 + $0x40] sm:$0xff]
        %v343 = vld [vmem:[%s307 + $0x48] sm:$0xff]
        %v344 = vld [vmem:[%s307 + $0x50] sm:$0xff]
        %v345 = vld [vmem:[%s307 + $0x58] sm:$0xff]
        %v346 = vld [vmem:[%s307 + $0x60] sm:$0xff]
        %v347 = vld [vmem:[%s307 + $0x68] sm:$0xff]
        %v348 = vld [vmem:[%s307 + $0x70] sm:$0xff]
        %v349 = vld [vmem:[%s307 + $0x78] sm:$0xff]
        %366 = vrot.lane.b32.xlu0 %v334, 32
        %v367 = vpop.permute.xlu0 %366
        %368 = vrot.lane.b32.xlu0 %v335, 32
        %v369 = vpop.permute.xlu0 %368
        %370 = vrot.lane.b32.xlu0 %v336, 32
        %v371 = vpop.permute.xlu0 %370
        %372 = vrot.lane.b32.xlu0 %v337, 32
        %v373 = vpop.permute.xlu0 %372
        %374 = vrot.lane.b32.xlu0 %v338, 32
        %v375 = vpop.permute.xlu0 %374
        %376 = vrot.lane.b32.xlu0 %v339, 32
        %v377 = vpop.permute.xlu0 %376
        %378 = vrot.lane.b32.xlu0 %v340, 32
        %v379 = vpop.permute.xlu0 %378
        %380 = vrot.lane.b32.xlu0 %v341, 32
        %v381 = vpop.permute.xlu0 %380
        %382 = vrot.lane.b32.xlu0 %v342, 32
        %v383 = vpop.permute.xlu0 %382
        %384 = vrot.lane.b32.xlu0 %v343, 32
        %v385 = vpop.permute.xlu0 %384
        %386 = vrot.lane.b32.xlu0 %v344, 32
        %v387 = vpop.permute.xlu0 %386
        %388 = vrot.lane.b32.xlu0 %v345, 32
        %v389 = vpop.permute.xlu0 %388
        %390 = vrot.lane.b32.xlu0 %v346, 32
        %v391 = vpop.permute.xlu0 %390
        %392 = vrot.lane.b32.xlu0 %v347, 32
        %v393 = vpop.permute.xlu0 %392
        %394 = vrot.lane.b32.xlu0 %v348, 32
        %v395 = vpop.permute.xlu0 %394
        %396 = vrot.lane.b32.xlu0 %v349, 32
        %v397 = vpop.permute.xlu0 %396
        %vm414 = vcmask 261120
        %v415 = vsel %vm414, %v318, %v367
        %v416 = vsel %vm414, %v319, %v369
        %v417 = vsel %vm414, %v320, %v371
        %v418 = vsel %vm414, %v321, %v373
        %v419 = vsel %vm414, %v322, %v375
        %v420 = vsel %vm414, %v323, %v377
        %v421 = vsel %vm414, %v324, %v379
        %v422 = vsel %vm414, %v325, %v381
        %v423 = vsel %vm414, %v326, %v383
        %v424 = vsel %vm414, %v327, %v385
        %v425 = vsel %vm414, %v328, %v387
        %v426 = vsel %vm414, %v329, %v389
        %v427 = vsel %vm414, %v330, %v391
        %v428 = vsel %vm414, %v331, %v393
        %v429 = vsel %vm414, %v332, %v395
        %v430 = vsel %vm414, %v333, %v397
        %v431 = vpack.c.bf16 %v416, %v415
        %v432 = vpack.c.bf16 %v418, %v417
        %v433 = vpack.c.bf16 %v420, %v419
        %v434 = vpack.c.bf16 %v422, %v421
        %v435 = vpack.c.bf16 %v424, %v423
        %v436 = vpack.c.bf16 %v426, %v425
        %v437 = vpack.c.bf16 %v428, %v427
        %v438 = vpack.c.bf16 %v430, %v429
        %v439 = vld [vmem:[%s2] sm:$0xff]
        %v440 = vld [vmem:[%s2 + $0x8] sm:$0xff]
        %v441 = vld [vmem:[%s2 + $0x10] sm:$0xff]
        %v442 = vld [vmem:[%s2 + $0x18] sm:$0xff]
        %v443 = vld [vmem:[%s2 + $0x20] sm:$0xff]
        %v444 = vld [vmem:[%s2 + $0x28] sm:$0xff]
        %v445 = vld [vmem:[%s2 + $0x30] sm:$0xff]
        %v446 = vld [vmem:[%s2 + $0x38] sm:$0xff]
        %v447 = vld [vmem:[%s3] sm:$0x3]
        %v449 = vlaneseq
        %v450 = vshrl.u32 %v449, 7
        %v451 = vsub.s32 0, %v450
        %v452 = vrot.slane %v447, %v451
        %v453 = vlaneseq
        %v454 = vshrl.u32 %v453, 7
        %v455 = vsub.s32 1, %v454
        %v456 = vrot.slane %v447, %v455
        %v467 = vunpack.c.l.b16 %v439
        %v468 = vunpack.c.h.b16 %v439
        %v469 = vunpack.c.l.b16 %v440
        %v470 = vunpack.c.h.b16 %v440
        %v471 = vunpack.c.l.b16 %v441
        %v472 = vunpack.c.h.b16 %v441
        %v473 = vunpack.c.l.b16 %v442
        %v474 = vunpack.c.h.b16 %v442
        %v475 = vunpack.c.l.b16 %v443
        %v476 = vunpack.c.h.b16 %v443
        %v477 = vunpack.c.l.b16 %v444
        %v478 = vunpack.c.h.b16 %v444
        %v479 = vunpack.c.l.b16 %v445
        %v480 = vunpack.c.h.b16 %v445
        %v481 = vunpack.c.l.b16 %v446
        %v482 = vunpack.c.h.b16 %v446
        %v483 = vpack.c.b16 %v469, %v467
        %v484 = vpack.c.b16 %v470, %v468
        %v485 = vpack.c.b16 %v473, %v471
        %v486 = vpack.c.b16 %v474, %v472
        %v487 = vpack.c.b16 %v477, %v475
        %v488 = vpack.c.b16 %v478, %v476
        %v489 = vpack.c.b16 %v481, %v479
        %v490 = vpack.c.b16 %v482, %v480
        %vm499 = vcmask 523264
        %v501 = vsel %vm499, %v431, 0
        %v504 = vsel %vm499, %v432, 0
        %v507 = vsel %vm499, %v433, 0
        %v510 = vsel %vm499, %v434, 0
        %v513 = vsel %vm499, %v435, 0
        %v516 = vsel %vm499, %v436, 0
        %v519 = vsel %vm499, %v437, 0
        %v522 = vsel %vm499, %v438, 0
        %524 = vmatprep.subr.bf16.mxu0 %v484
        %525 = vmatpush1.bf16.msra.mxu0 %v483
        %526 = vmatprep.subr.bf16.mxu0 %v486
        %527 = vmatpush1.bf16.msra.mxu0 %v485
        %528 = vmatprep.subr.bf16.mxu0 %v488
        %529 = vmatpush1.bf16.msra.mxu0 %v487
        %530 = vmatprep.subr.bf16.mxu0 %v490
        %531 = vmatpush1.bf16.msra.mxu0 %v489
        %532 = vmatprep.subr.bf16.mxu0 0
        %533 = vmatpush1.bf16.msra.mxu0 0
        %534 = vmatprep.subr.bf16.mxu0 0
        %535 = vmatpush1.bf16.msra.mxu0 0
        %536 = vmatprep.subr.bf16.mxu0 0
        %537 = vmatpush1.bf16.msra.mxu0 0
        %538 = vmatprep.subr.bf16.mxu0 0
        %539 = vmatpush1.bf16.msra.mxu0 0
        %540 = vmatprep.subr.bf16.mxu0 0
        %541 = vmatpush1.bf16.msra.mxu0 0
        %542 = vmatprep.subr.bf16.mxu0 0
        %543 = vmatpush1.bf16.msra.mxu0 0
        %544 = vmatprep.subr.bf16.mxu0 0
        %545 = vmatpush1.bf16.msra.mxu0 0
        %546 = vmatprep.subr.bf16.mxu0 0
        %547 = vmatpush1.bf16.msra.mxu0 0
        %548 = vmatprep.subr.bf16.mxu0 0
        %549 = vmatpush1.bf16.msra.mxu0 0
        %550 = vmatprep.subr.bf16.mxu0 0
        %551 = vmatpush1.bf16.msra.mxu0 0
        %552 = vmatprep.subr.bf16.mxu0 0
        %553 = vmatpush1.bf16.msra.mxu0 0
        %554 = vmatprep.subr.bf16.mxu0 0
        %555 = vmatpush1.bf16.msra.mxu0 0
        %556 = vmatprep.mubr.bf16.mxu0 0
        %557 = vmatmul.mubr.bf16.gmra.mrb[0].mxu0 %v501
        %v558 = vpop.f32.mrb[0].mxu0
        %v559 = vadd.f32 %v452, %v558
        %v560 = vpop.f32.mrb[0].mxu0
        %v561 = vadd.f32 %v456, %v560
        %v562 = vpop.f32.mrb[0].mxu0
        %v563 = vadd.f32 %v452, %v562
        %v564 = vpop.f32.mrb[0].mxu0
        %v565 = vadd.f32 %v456, %v564
        %566 = vmatprep.mubr.bf16.mxu0 0
        %567 = vmatmul.mubr.bf16.gmra.mrb[0].mxu0 %v504
        %v568 = vpop.f32.mrb[0].mxu0
        %v569 = vadd.f32 %v452, %v568
        %v570 = vpop.f32.mrb[0].mxu0
        %v571 = vadd.f32 %v456, %v570
        %v572 = vpop.f32.mrb[0].mxu0
        %v573 = vadd.f32 %v452, %v572
        %v574 = vpop.f32.mrb[0].mxu0
        %v575 = vadd.f32 %v456, %v574
        %576 = vmatprep.mubr.bf16.mxu0 0
        %577 = vmatmul.mubr.bf16.gmra.mrb[0].mxu0 %v507
        %v578 = vpop.f32.mrb[0].mxu0
        %v579 = vadd.f32 %v452, %v578
        %v580 = vpop.f32.mrb[0].mxu0
        %v581 = vadd.f32 %v456, %v580
        %v582 = vpop.f32.mrb[0].mxu0
        %v583 = vadd.f32 %v452, %v582
        %v584 = vpop.f32.mrb[0].mxu0
        %v585 = vadd.f32 %v456, %v584
        %586 = vmatprep.mubr.bf16.mxu0 0
        %587 = vmatmul.mubr.bf16.gmra.mrb[0].mxu0 %v510
        %v588 = vpop.f32.mrb[0].mxu0
        %v589 = vadd.f32 %v452, %v588
        %v590 = vpop.f32.mrb[0].mxu0
        %v591 = vadd.f32 %v456, %v590
        %v592 = vpop.f32.mrb[0].mxu0
        %v593 = vadd.f32 %v452, %v592
        %v594 = vpop.f32.mrb[0].mxu0
        %v595 = vadd.f32 %v456, %v594
        %596 = vmatprep.mubr.bf16.mxu0 0
        %597 = vmatmul.mubr.bf16.gmra.mrb[0].mxu0 %v513
        %v598 = vpop.f32.mrb[0].mxu0
        %v599 = vadd.f32 %v452, %v598
        %v600 = vpop.f32.mrb[0].mxu0
        %v601 = vadd.f32 %v456, %v600
        %v602 = vpop.f32.mrb[0].mxu0
        %v603 = vadd.f32 %v452, %v602
        %v604 = vpop.f32.mrb[0].mxu0
        %v605 = vadd.f32 %v456, %v604
        %606 = vmatprep.mubr.bf16.mxu0 0
        %607 = vmatmul.mubr.bf16.gmra.mrb[0].mxu0 %v516
        %v608 = vpop.f32.mrb[0].mxu0
        %v609 = vadd.f32 %v452, %v608
        %v610 = vpop.f32.mrb[0].mxu0
        %v611 = vadd.f32 %v456, %v610
        %v612 = vpop.f32.mrb[0].mxu0
        %v613 = vadd.f32 %v452, %v612
        %v614 = vpop.f32.mrb[0].mxu0
        %v615 = vadd.f32 %v456, %v614
        %616 = vmatprep.mubr.bf16.mxu0 0
        %617 = vmatmul.mubr.bf16.gmra.mrb[0].mxu0 %v519
        %v618 = vpop.f32.mrb[0].mxu0
        %v619 = vadd.f32 %v452, %v618
        %v620 = vpop.f32.mrb[0].mxu0
        %v621 = vadd.f32 %v456, %v620
        %v622 = vpop.f32.mrb[0].mxu0
        %v623 = vadd.f32 %v452, %v622
        %v624 = vpop.f32.mrb[0].mxu0
        %v625 = vadd.f32 %v456, %v624
        %626 = vmatprep.mubr.bf16.mxu0 0
        %627 = vmatmul.mubr.bf16.gmra.mrb[0].mxu0 %v522
        %v628 = vpop.f32.mrb[0].mxu0
        %v629 = vadd.f32 %v452, %v628
        %v630 = vpop.f32.mrb[0].mxu0
        %v631 = vadd.f32 %v456, %v630
        %v632 = vpop.f32.mrb[0].mxu0
        %v633 = vadd.f32 %v452, %v632
        %v634 = vpop.f32.mrb[0].mxu0
        %v635 = vadd.f32 %v456, %v634
        %636 = vdwg.mxu0
        %v637 = vmax.f32 %v559, 0.0
        %v638 = vmax.f32 %v561, 0.0
        %v639 = vmax.f32 %v563, 0.0
        %v640 = vmax.f32 %v565, 0.0
        %v641 = vmax.f32 %v569, 0.0
        %v642 = vmax.f32 %v571, 0.0
        %v643 = vmax.f32 %v573, 0.0
        %v644 = vmax.f32 %v575, 0.0
        %v645 = vmax.f32 %v579, 0.0
        %v646 = vmax.f32 %v581, 0.0
        %v647 = vmax.f32 %v583, 0.0
        %v648 = vmax.f32 %v585, 0.0
        %v649 = vmax.f32 %v589, 0.0
        %v650 = vmax.f32 %v591, 0.0
        %v651 = vmax.f32 %v593, 0.0
        %v652 = vmax.f32 %v595, 0.0
        %v653 = vmax.f32 %v599, 0.0
        %v654 = vmax.f32 %v601, 0.0
        %v655 = vmax.f32 %v603, 0.0
        %v656 = vmax.f32 %v605, 0.0
        %v657 = vmax.f32 %v609, 0.0
        %v658 = vmax.f32 %v611, 0.0
        %v659 = vmax.f32 %v613, 0.0
        %v660 = vmax.f32 %v615, 0.0
        %v661 = vmax.f32 %v619, 0.0
        %v662 = vmax.f32 %v621, 0.0
        %v663 = vmax.f32 %v623, 0.0
        %v664 = vmax.f32 %v625, 0.0
        %v665 = vmax.f32 %v629, 0.0
        %v666 = vmax.f32 %v631, 0.0
        %v667 = vmax.f32 %v633, 0.0
        %v668 = vmax.f32 %v635, 0.0
        %v669 = vpack.c.bf16 %v639, %v637
        %v670 = vpack.c.bf16 %v640, %v638
        %v671 = vpack.c.bf16 %v643, %v641
        %v672 = vpack.c.bf16 %v644, %v642
        %v673 = vpack.c.bf16 %v647, %v645
        %v674 = vpack.c.bf16 %v648, %v646
        %v675 = vpack.c.bf16 %v651, %v649
        %v676 = vpack.c.bf16 %v652, %v650
        %v677 = vpack.c.bf16 %v655, %v653
        %v678 = vpack.c.bf16 %v656, %v654
        %v679 = vpack.c.bf16 %v659, %v657
        %v680 = vpack.c.bf16 %v660, %v658
        %v681 = vpack.c.bf16 %v663, %v661
        %v682 = vpack.c.bf16 %v664, %v662
        %v683 = vpack.c.bf16 %v667, %v665
        %v684 = vpack.c.bf16 %v668, %v666
        %v685 = vld [vmem:[%s4] sm:$0xff]
        %v686 = vld [vmem:[%s4 + $0x8] sm:$0xff]
        %v687 = vld [vmem:[%s4 + $0x10] sm:$0xff]
        %v688 = vld [vmem:[%s4 + $0x18] sm:$0xff]
        %v689 = vld [vmem:[%s4 + $0x20] sm:$0xff]
        %v690 = vld [vmem:[%s4 + $0x28] sm:$0xff]
        %v691 = vld [vmem:[%s4 + $0x30] sm:$0xff]
        %v692 = vld [vmem:[%s4 + $0x38] sm:$0xff]
        %v693 = vld [vmem:[%s4 + $0x40] sm:$0xff]
        %v694 = vld [vmem:[%s4 + $0x48] sm:$0xff]
        %v695 = vld [vmem:[%s4 + $0x50] sm:$0xff]
        %v696 = vld [vmem:[%s4 + $0x58] sm:$0xff]
        %v697 = vld [vmem:[%s4 + $0x60] sm:$0xff]
        %v698 = vld [vmem:[%s4 + $0x68] sm:$0xff]
        %v699 = vld [vmem:[%s4 + $0x70] sm:$0xff]
        %v700 = vld [vmem:[%s4 + $0x78] sm:$0xff]
        %v701 = vld [vmem:[%s4 + $0x80] sm:$0xff]
        %v702 = vld [vmem:[%s4 + $0x88] sm:$0xff]
        %v703 = vld [vmem:[%s4 + $0x90] sm:$0xff]
        %v704 = vld [vmem:[%s4 + $0x98] sm:$0xff]
        %v705 = vld [vmem:[%s4 + $0xa0] sm:$0xff]
        %v706 = vld [vmem:[%s4 + $0xa8] sm:$0xff]
        %v707 = vld [vmem:[%s4 + $0xb0] sm:$0xff]
        %v708 = vld [vmem:[%s4 + $0xb8] sm:$0xff]
        %v709 = vld [vmem:[%s4 + $0xc0] sm:$0xff]
        %v710 = vld [vmem:[%s4 + $0xc8] sm:$0xff]
        %v711 = vld [vmem:[%s4 + $0xd0] sm:$0xff]
        %v712 = vld [vmem:[%s4 + $0xd8] sm:$0xff]
        %v713 = vld [vmem:[%s4 + $0xe0] sm:$0xff]
        %v714 = vld [vmem:[%s4 + $0xe8] sm:$0xff]
        %v715 = vld [vmem:[%s4 + $0xf0] sm:$0xff]
        %v716 = vld [vmem:[%s4 + $0xf8] sm:$0xff]
        %v717 = vld [vmem:[%s5] sm:$0x3]
        %v719 = vlaneseq
        %v720 = vshrl.u32 %v719, 7
        %v721 = vsub.s32 0, %v720
        %v722 = vrot.slane %v717, %v721
        %v723 = vlaneseq
        %v724 = vshrl.u32 %v723, 7
        %v725 = vsub.s32 1, %v724
        %v726 = vrot.slane %v717, %v725
        %v761 = vunpack.c.l.b16 %v685
        %v762 = vunpack.c.h.b16 %v685
        %v763 = vunpack.c.l.b16 %v686
        %v764 = vunpack.c.h.b16 %v686
        %v765 = vunpack.c.l.b16 %v687
        %v766 = vunpack.c.h.b16 %v687
        %v767 = vunpack.c.l.b16 %v688
        %v768 = vunpack.c.h.b16 %v688
        %v769 = vunpack.c.l.b16 %v689
        %v770 = vunpack.c.h.b16 %v689
        %v771 = vunpack.c.l.b16 %v690
        %v772 = vunpack.c.h.b16 %v690
        %v773 = vunpack.c.l.b16 %v691
        %v774 = vunpack.c.h.b16 %v691
        %v775 = vunpack.c.l.b16 %v692
        %v776 = vunpack.c.h.b16 %v692
        %v777 = vunpack.c.l.b16 %v693
        %v778 = vunpack.c.h.b16 %v693
        %v779 = vunpack.c.l.b16 %v694
        %v780 = vunpack.c.h.b16 %v694
        %v781 = vunpack.c.l.b16 %v695
        %v782 = vunpack.c.h.b16 %v695
        %v783 = vunpack.c.l.b16 %v696
        %v784 = vunpack.c.h.b16 %v696
        %v785 = vunpack.c.l.b16 %v697
        %v786 = vunpack.c.h.b16 %v697
        %v787 = vunpack.c.l.b16 %v698
        %v788 = vunpack.c.h.b16 %v698
        %v789 = vunpack.c.l.b16 %v699
        %v790 = vunpack.c.h.b16 %v699
        %v791 = vunpack.c.l.b16 %v700
        %v792 = vunpack.c.h.b16 %v700
        %v793 = vunpack.c.l.b16 %v701
        %v794 = vunpack.c.h.b16 %v701
        %v795 = vunpack.c.l.b16 %v702
        %v796 = vunpack.c.h.b16 %v702
        %v797 = vunpack.c.l.b16 %v703
        %v798 = vunpack.c.h.b16 %v703
        %v799 = vunpack.c.l.b16 %v704
        %v800 = vunpack.c.h.b16 %v704
        %v801 = vunpack.c.l.b16 %v705
        %v802 = vunpack.c.h.b16 %v705
        %v803 = vunpack.c.l.b16 %v706
        %v804 = vunpack.c.h.b16 %v706
        %v805 = vunpack.c.l.b16 %v707
        %v806 = vunpack.c.h.b16 %v707
        %v807 = vunpack.c.l.b16 %v708
        %v808 = vunpack.c.h.b16 %v708
        %v809 = vunpack.c.l.b16 %v709
        %v810 = vunpack.c.h.b16 %v709
        %v811 = vunpack.c.l.b16 %v710
        %v812 = vunpack.c.h.b16 %v710
        %v813 = vunpack.c.l.b16 %v711
        %v814 = vunpack.c.h.b16 %v711
        %v815 = vunpack.c.l.b16 %v712
        %v816 = vunpack.c.h.b16 %v712
        %v817 = vunpack.c.l.b16 %v713
        %v818 = vunpack.c.h.b16 %v713
        %v819 = vunpack.c.l.b16 %v714
        %v820 = vunpack.c.h.b16 %v714
        %v821 = vunpack.c.l.b16 %v715
        %v822 = vunpack.c.h.b16 %v715
        %v823 = vunpack.c.l.b16 %v716
        %v824 = vunpack.c.h.b16 %v716
        %v825 = vpack.c.b16 %v763, %v761
        %v826 = vpack.c.b16 %v764, %v762
        %v827 = vpack.c.b16 %v767, %v765
        %v828 = vpack.c.b16 %v768, %v766
        %v829 = vpack.c.b16 %v771, %v769
        %v830 = vpack.c.b16 %v772, %v770
        %v831 = vpack.c.b16 %v775, %v773
        %v832 = vpack.c.b16 %v776, %v774
        %v833 = vpack.c.b16 %v779, %v777
        %v834 = vpack.c.b16 %v780, %v778
        %v835 = vpack.c.b16 %v783, %v781
        %v836 = vpack.c.b16 %v784, %v782
        %v837 = vpack.c.b16 %v787, %v785
        %v838 = vpack.c.b16 %v788, %v786
        %v839 = vpack.c.b16 %v791, %v789
        %v840 = vpack.c.b16 %v792, %v790
        %v841 = vpack.c.b16 %v795, %v793
        %v842 = vpack.c.b16 %v796, %v794
        %v843 = vpack.c.b16 %v799, %v797
        %v844 = vpack.c.b16 %v800, %v798
        %v845 = vpack.c.b16 %v803, %v801
        %v846 = vpack.c.b16 %v804, %v802
        %v847 = vpack.c.b16 %v807, %v805
        %v848 = vpack.c.b16 %v808, %v806
        %v849 = vpack.c.b16 %v811, %v809
        %v850 = vpack.c.b16 %v812, %v810
        %v851 = vpack.c.b16 %v815, %v813
        %v852 = vpack.c.b16 %v816, %v814
        %v853 = vpack.c.b16 %v819, %v817
        %v854 = vpack.c.b16 %v820, %v818
        %v855 = vpack.c.b16 %v823, %v821
        %v856 = vpack.c.b16 %v824, %v822
        %889 = vmatprep.subr.bf16.mxu0 %v826
        %890 = vmatpush1.bf16.msra.mxu0 %v825
        %891 = vmatprep.subr.bf16.mxu0 %v828
        %892 = vmatpush1.bf16.msra.mxu0 %v827
        %893 = vmatprep.subr.bf16.mxu0 %v830
        %894 = vmatpush1.bf16.msra.mxu0 %v829
        %895 = vmatprep.subr.bf16.mxu0 %v832
        %896 = vmatpush1.bf16.msra.mxu0 %v831
        %897 = vmatprep.subr.bf16.mxu0 %v834
        %898 = vmatpush1.bf16.msra.mxu0 %v833
        %899 = vmatprep.subr.bf16.mxu0 %v836
        %900 = vmatpush1.bf16.msra.mxu0 %v835
        %901 = vmatprep.subr.bf16.mxu0 %v838
        %902 = vmatpush1.bf16.msra.mxu0 %v837
        %903 = vmatprep.subr.bf16.mxu0 %v840
        %904 = vmatpush1.bf16.msra.mxu0 %v839
        %905 = vmatprep.subr.bf16.mxu0 %v842
        %906 = vmatpush1.bf16.msra.mxu0 %v841
        %907 = vmatprep.subr.bf16.mxu0 %v844
        %908 = vmatpush1.bf16.msra.mxu0 %v843
        %909 = vmatprep.subr.bf16.mxu0 %v846
        %910 = vmatpush1.bf16.msra.mxu0 %v845
        %911 = vmatprep.subr.bf16.mxu0 %v848
        %912 = vmatpush1.bf16.msra.mxu0 %v847
        %913 = vmatprep.subr.bf16.mxu0 %v850
        %914 = vmatpush1.bf16.msra.mxu0 %v849
        %915 = vmatprep.subr.bf16.mxu0 %v852
        %916 = vmatpush1.bf16.msra.mxu0 %v851
        %917 = vmatprep.subr.bf16.mxu0 %v854
        %918 = vmatpush1.bf16.msra.mxu0 %v853
        %919 = vmatprep.subr.bf16.mxu0 %v856
        %920 = vmatpush1.bf16.msra.mxu0 %v855
        %921 = vmatprep.mubr.bf16.mxu0 %v670
        %922 = vmatmul.mubr.bf16.gmra.mrb[0].mxu0 %v669
        %v923 = vpop.f32.mrb[0].mxu0
        %v924 = vadd.f32 %v722, %v923
        %v925 = vpop.f32.mrb[0].mxu0
        %v926 = vadd.f32 %v726, %v925
        %v927 = vpop.f32.mrb[0].mxu0
        %v928 = vadd.f32 %v722, %v927
        %v929 = vpop.f32.mrb[0].mxu0
        %v930 = vadd.f32 %v726, %v929
        %931 = vmatprep.mubr.bf16.mxu0 %v672
        %932 = vmatmul.mubr.bf16.gmra.mrb[0].mxu0 %v671
        %v933 = vpop.f32.mrb[0].mxu0
        %v934 = vadd.f32 %v722, %v933
        %v935 = vpop.f32.mrb[0].mxu0
        %v936 = vadd.f32 %v726, %v935
        %v937 = vpop.f32.mrb[0].mxu0
        %v938 = vadd.f32 %v722, %v937
        %v939 = vpop.f32.mrb[0].mxu0
        %v940 = vadd.f32 %v726, %v939
        %941 = vmatprep.mubr.bf16.mxu0 %v674
        %942 = vmatmul.mubr.bf16.gmra.mrb[0].mxu0 %v673
        %v943 = vpop.f32.mrb[0].mxu0
        %v944 = vadd.f32 %v722, %v943
        %v945 = vpop.f32.mrb[0].mxu0
        %v946 = vadd.f32 %v726, %v945
        %v947 = vpop.f32.mrb[0].mxu0
        %v948 = vadd.f32 %v722, %v947
        %v949 = vpop.f32.mrb[0].mxu0
        %v950 = vadd.f32 %v726, %v949
        %951 = vmatprep.mubr.bf16.mxu0 %v676
        %952 = vmatmul.mubr.bf16.gmra.mrb[0].mxu0 %v675
        %v953 = vpop.f32.mrb[0].mxu0
        %v954 = vadd.f32 %v722, %v953
        %v955 = vpop.f32.mrb[0].mxu0
        %v956 = vadd.f32 %v726, %v955
        %v957 = vpop.f32.mrb[0].mxu0
        %v958 = vadd.f32 %v722, %v957
        %v959 = vpop.f32.mrb[0].mxu0
        %v960 = vadd.f32 %v726, %v959
        %961 = vmatprep.mubr.bf16.mxu0 %v678
        %962 = vmatmul.mubr.bf16.gmra.mrb[0].mxu0 %v677
        %v963 = vpop.f32.mrb[0].mxu0
        %v964 = vadd.f32 %v722, %v963
        %v965 = vpop.f32.mrb[0].mxu0
        %v966 = vadd.f32 %v726, %v965
        %v967 = vpop.f32.mrb[0].mxu0
        %v968 = vadd.f32 %v722, %v967
        %v969 = vpop.f32.mrb[0].mxu0
        %v970 = vadd.f32 %v726, %v969
        %971 = vmatprep.mubr.bf16.mxu0 %v680
        %972 = vmatmul.mubr.bf16.gmra.mrb[0].mxu0 %v679
        %v973 = vpop.f32.mrb[0].mxu0
        %v974 = vadd.f32 %v722, %v973
        %v975 = vpop.f32.mrb[0].mxu0
        %v976 = vadd.f32 %v726, %v975
        %v977 = vpop.f32.mrb[0].mxu0
        %v978 = vadd.f32 %v722, %v977
        %v979 = vpop.f32.mrb[0].mxu0
        %v980 = vadd.f32 %v726, %v979
        %981 = vmatprep.mubr.bf16.mxu0 %v682
        %982 = vmatmul.mubr.bf16.gmra.mrb[0].mxu0 %v681
        %v983 = vpop.f32.mrb[0].mxu0
        %v984 = vadd.f32 %v722, %v983
        %v985 = vpop.f32.mrb[0].mxu0
        %v986 = vadd.f32 %v726, %v985
        %v987 = vpop.f32.mrb[0].mxu0
        %v988 = vadd.f32 %v722, %v987
        %v989 = vpop.f32.mrb[0].mxu0
        %v990 = vadd.f32 %v726, %v989
        %991 = vmatprep.mubr.bf16.mxu0 %v684
        %992 = vmatmul.mubr.bf16.gmra.mrb[0].mxu0 %v683
        %v993 = vpop.f32.mrb[0].mxu0
        %v994 = vadd.f32 %v722, %v993
        %v995 = vpop.f32.mrb[0].mxu0
        %v996 = vadd.f32 %v726, %v995
        %v997 = vpop.f32.mrb[0].mxu0
        %v998 = vadd.f32 %v722, %v997
        %v999 = vpop.f32.mrb[0].mxu0
        %v1000 = vadd.f32 %v726, %v999
        %1001 = vdwg.mxu0
        %1002 = vst [vmem:[%s314] sm:$0xff] %v924
        %1003 = vst [vmem:[%s314 + $0x8] sm:$0xff] %v926
        %1004 = vst [vmem:[%s314 + $0x10] sm:$0xff] %v928
        %1005 = vst [vmem:[%s314 + $0x18] sm:$0xff] %v930
        %1006 = vst [vmem:[%s314 + $0x20] sm:$0xff] %v934
        %1007 = vst [vmem:[%s314 + $0x28] sm:$0xff] %v936
        %1008 = vst [vmem:[%s314 + $0x30] sm:$0xff] %v938
        %1009 = vst [vmem:[%s314 + $0x38] sm:$0xff] %v940
        %1010 = vst [vmem:[%s314 + $0x40] sm:$0xff] %v944
        %1011 = vst [vmem:[%s314 + $0x48] sm:$0xff] %v946
        %1012 = vst [vmem:[%s314 + $0x50] sm:$0xff] %v948
        %1013 = vst [vmem:[%s314 + $0x58] sm:$0xff] %v950
        %1014 = vst [vmem:[%s314 + $0x60] sm:$0xff] %v954
        %1015 = vst [vmem:[%s314 + $0x68] sm:$0xff] %v956
        %1016 = vst [vmem:[%s314 + $0x70] sm:$0xff] %v958
        %1017 = vst [vmem:[%s314 + $0x78] sm:$0xff] %v960
        %1018 = vst [vmem:[%s314 + $0x80] sm:$0xff] %v964
        %1019 = vst [vmem:[%s314 + $0x88] sm:$0xff] %v966
        %1020 = vst [vmem:[%s314 + $0x90] sm:$0xff] %v968
        %1021 = vst [vmem:[%s314 + $0x98] sm:$0xff] %v970
        %1022 = vst [vmem:[%s314 + $0xa0] sm:$0xff] %v974
        %1023 = vst [vmem:[%s314 + $0xa8] sm:$0xff] %v976
        %1024 = vst [vmem:[%s314 + $0xb0] sm:$0xff] %v978
        %1025 = vst [vmem:[%s314 + $0xb8] sm:$0xff] %v980
        %1026 = vst [vmem:[%s314 + $0xc0] sm:$0xff] %v984
        %1027 = vst [vmem:[%s314 + $0xc8] sm:$0xff] %v986
        %1028 = vst [vmem:[%s314 + $0xd0] sm:$0xff] %v988
        %1029 = vst [vmem:[%s314 + $0xd8] sm:$0xff] %v990
        %1030 = vst [vmem:[%s314 + $0xe0] sm:$0xff] %v994
        %1031 = vst [vmem:[%s314 + $0xe8] sm:$0xff] %v996
        %1032 = vst [vmem:[%s314 + $0xf0] sm:$0xff] %v998
        %1033 = vst [vmem:[%s314 + $0xf8] sm:$0xff] %v1000
        %v1034 = vmul.f32 %v924, %v926
        %v1035 = vmul.f32 %v928, %v930
        %v1036 = vmul.f32 %v934, %v936
        %v1037 = vmul.f32 %v938, %v940
        %v1038 = vmul.f32 %v944, %v946
        %v1039 = vmul.f32 %v948, %v950
        %v1040 = vmul.f32 %v954, %v956
        %v1041 = vmul.f32 %v958, %v960
        %v1042 = vmul.f32 %v964, %v966
        %v1043 = vmul.f32 %v968, %v970
        %v1044 = vmul.f32 %v974, %v976
        %v1045 = vmul.f32 %v978, %v980
        %v1046 = vmul.f32 %v984, %v986
        %v1047 = vmul.f32 %v988, %v990
        %v1048 = vmul.f32 %v994, %v996
        %v1049 = vmul.f32 %v998, %v1000
        %v1050 = vpack.c.bf16 %v1035, %v1034
        %v1051 = vpack.c.bf16 %v1037, %v1036
        %v1052 = vpack.c.bf16 %v1039, %v1038
        %v1053 = vpack.c.bf16 %v1041, %v1040
        %v1054 = vpack.c.bf16 %v1043, %v1042
        %v1055 = vpack.c.bf16 %v1045, %v1044
        %v1056 = vpack.c.bf16 %v1047, %v1046
        %v1057 = vpack.c.bf16 %v1049, %v1048
        %1058 = vmatprep.subr.bf16.mxu0 0
        %1059 = vmatpush1.bf16.xpose.msra.mxu0 %v1050
        %1060 = vmatprep.subr.bf16.mxu0 0
        %1061 = vmatpush1.bf16.xpose.msra.mxu0 %v1051
        %1062 = vmatprep.subr.bf16.mxu0 0
        %1063 = vmatpush1.bf16.xpose.msra.mxu0 %v1052
        %1064 = vmatprep.subr.bf16.mxu0 0
        %1065 = vmatpush1.bf16.xpose.msra.mxu0 %v1053
        %1066 = vmatprep.subr.bf16.mxu0 0
        %1067 = vmatpush1.bf16.xpose.msra.mxu0 %v1054
        %1068 = vmatprep.subr.bf16.mxu0 0
        %1069 = vmatpush1.bf16.xpose.msra.mxu0 %v1055
        %1070 = vmatprep.subr.bf16.mxu0 0
        %1071 = vmatpush1.bf16.xpose.msra.mxu0 %v1056
        %1072 = vmatprep.subr.bf16.mxu0 0
        %1073 = vmatpush1.bf16.xpose.msra.mxu0 %v1057
        %1074 = vmatprep.subr.bf16.mxu0 0
        %1075 = vmatpush1.bf16.xpose.msra.mxu0 0
        %1076 = vmatprep.subr.bf16.mxu0 0
        %1077 = vmatpush1.bf16.xpose.msra.mxu0 0
        %1078 = vmatprep.subr.bf16.mxu0 0
        %1079 = vmatpush1.bf16.xpose.msra.mxu0 0
        %1080 = vmatprep.subr.bf16.mxu0 0
        %1081 = vmatpush1.bf16.xpose.msra.mxu0 0
        %1082 = vmatprep.subr.bf16.mxu0 0
        %1083 = vmatpush1.bf16.xpose.msra.mxu0 0
        %1084 = vmatprep.subr.bf16.mxu0 0
        %1085 = vmatpush1.bf16.xpose.msra.mxu0 0
        %1086 = vmatprep.subr.bf16.mxu0 0
        %1087 = vmatpush1.bf16.xpose.msra.mxu0 0
        %1088 = vmatprep.subr.bf16.mxu0 0
        %1089 = vmatpush1.bf16.xpose.msra.mxu0 0
        %1090 = vmatprep.mubr.bf16.mxu0 0
        %1091 = vmatmul.mubr.bf16.gmra.mrb[0].mxu0 1065369472
        %v1092 = vpop.f32.mrb[0].mxu0
        %v1093 = vadd.f32 0.0, %v1092
        %v1094 = vpop.f32.mrb[0].mxu0
        %v1095 = vpop.f32.mrb[0].mxu0
        %v1096 = vpop.f32.mrb[0].mxu0
        %1097 = vdwg.mxu0
        %1098 = vst [vmem:[%s296] sm:$0x1] %v1093
        %s1099 = smul.u32 16, %s22
        %p1100 = scmp.lt.s32.totalorder %s1099, 31
        %s1101 = scalar_select %p1100, %s1099, 31
        %s1102 = smul.addr %s1101, 2
        %s1103 = smul.addr %s1102, 8
        %s1104 = scalar_lea.vmem %s6, %s1103
        %s1105 = sand.u32 %s192, 1
        %s1106 = scalar_lea.sflag [#allocation3], %s1105
        %s1107 = sand.u32 %s192, 1
        %s1108 = scalar_lea.vmem [#allocation2], %s1107
        // Predicated region
        $region45: #{ipw_forward.1} parent=43 // pred_check
          %p1109 = pneg %p176
        $region46: #{ipw_forward.1} parent=43 // pred_check_branch
          %1111 = sbr.rel (%p1109) target = $region48
        $region47: #{ipw_forward.1} parent=43 // pred_region
          %s1112 = smul.u32 16, %s22
        $region48: #{ipw_forward.1} parent=43 // pred_fallthru
          _
        // Predicated region
        $region49: #{ipw_forward.1} parent=43 // pred_check
          %p1113 = pneg %p202
        $region50: #{ipw_forward.1} parent=43 // pred_check_branch
          %1115 = sbr.rel (%p1113) target = $region52
        $region51: #{ipw_forward.1} parent=43 // pred_region
          %s1117 = ssub.s32 16, 16
          %1118 = vsyncadd %s1106, %s1117
          %s1119 = smul.addr %s22, 16
          %s1120 = scalar_lea.hbm %s7, %s1119
          %s1122 = sshll.u32 %s1108, 4
          %s1123 = int_to_ptr.vmem [resolvable:$true] %s1122
          %1125 = dma.vmem_to_hbm [thread:$0]  %s1123, 16, %s1120, %s1106
        $region52: #{ipw_forward.1} parent=43 // pred_fallthru
          _
      $region44: #{ipw_forward.1} parent=5 // pred_fallthru
        _
      %p1126 = scmp.le.s32.totalorder 2, %s17
      // Predicated region
      $region53: #{ipw_forward.1} parent=5 // pred_check
        %p1127 = pneg %p1126
      $region54: #{ipw_forward.1} parent=5 // pred_check_branch
        %1129 = sbr.rel (%p1127) target = $region56
      $region55: #{ipw_forward.1} parent=5 // pred_region
        %s1130 = ssub.s32 %s17, 2
        // Predicated region
        $region57: #{ipw_forward.1} parent=55 // pred_check
          %p1131 = pneg %p182
        $region58: #{ipw_forward.1} parent=55 // pred_check_branch
          %1133 = sbr.rel (%p1131) target = $region60
        $region59: #{ipw_forward.1} parent=55 // pred_region
          %s1134 = smul.u32 16, %s23
          %p1135 = scmp.lt.s32.totalorder %s1134, 31
          %s1136 = scalar_select %p1135, %s1134, 31
          %s1137 = smul.addr %s1136, 2
          %s1138 = smul.addr %s1137, 8
          %s1139 = scalar_lea.vmem %s6, %s1138
        $region60: #{ipw_forward.1} parent=55 // pred_fallthru
          _
        // Predicated region
        $region61: #{ipw_forward.1} parent=55 // pred_check
          %p1140 = pneg %p208
        $region62: #{ipw_forward.1} parent=55 // pred_check_branch
          %1142 = sbr.rel (%p1140) target = $region64
        $region63: #{ipw_forward.1} parent=55 // pred_region
          %s1143 = sand.u32 %s193, 1
          %s1144 = scalar_lea.sflag [#allocation3], %s1143
          %s1145 = sand.u32 %s193, 1
          %s1146 = scalar_lea.vmem [#allocation2], %s1145
          %1147 = dma.done %s1144, 16
        $region64: #{ipw_forward.1} parent=55 // pred_fallthru
          _
      $region56: #{ipw_forward.1} parent=5 // pred_fallthru
        _
    $region6: #{ipw_forward.1} parent=1 // loop_footer
      %s21 = sadd.s32 1, %s17
    $region7: #{ipw_forward.1} parent=1 // loop_footer_branch
      %16 = sbr.rel target = $region3
    $region8: #{ipw_forward.1} parent=1 // loop_exit
      _
    %1148 = vsyncpa [#allocation3], 1
    %s1149 = scalar_lea.sflag [#allocation3], 1
    %1150 = vsyncpa %s1149, 1

</llo_original>
